<compile_context>
chip_gen: v7x
topology: tpu7x:2x2x1
jax: 0.10.0
libtpu: 0.0.40
codegen_flags: <defaults>
</compile_context>

<pallas_src>
import jax
import jax.numpy as jnp
from jax.experimental import pallas as pl
from jax.experimental.pallas import tpu as pltpu

# ---- hyperparameters consistent with the PyTorch module ----
EMBEDDING_SIZE = 50      # Embedding_size
FILTER_NUM = 10          # Filter_num (conv out channels)
MAX_LENGTH = 62          # max_length
NUM_CLASSES = 2
VOCAB_SIZE = 37
KERNEL_H = 3             # conv kernel height

C_PAD = 128              # conv channels zero-padded to a full 128-lane vreg
OUT_PAD = 128            # logit columns zero-padded -> lane-dense output store
BATCH_TILE = 8           # batch rows processed per grid step


def _round_up(x, m):
    return (x + m - 1) // m * m


def _make_textcnn_kernel(batch_tile, t_pad):
    def kernel(x_ref, cw_ref, cb_ref, fcw_ref, fcb_ref, o_ref):
        # x_ref  : (batch_tile * t_pad, 3E)   im2col'd embeddings
        # cw_ref : (3E, C_PAD)                conv weight (flattened, zero-padded)
        # cb_ref : (1, C_PAD)                 conv bias (zero-padded)
        # fcw_ref: (C_PAD, OUT_PAD)           fc weight (zero-padded)
        # fcb_ref: (1, OUT_PAD)               fc bias (zero-padded)
        # o_ref  : (batch_tile, OUT_PAD)      padded logits (lane-dense store)

        # Conv2d(1, C, (3, E)) as a single merged MXU matmul over all rows.
        conv = jnp.dot(x_ref[...], cw_ref[...], preferred_element_type=jnp.float32)
        conv = jnp.maximum(conv + cb_ref[...], 0.0)            # bias + ReLU
        # t_pad % 8 == 0 -> layout-preserving reshape; MaxPool2d((L-2, 1)) is a
        # sublane max per batch row.
        conv = conv.reshape(batch_tile, t_pad, C_PAD)
        pooled = jnp.max(conv, axis=1)                         # (batch_tile, C_PAD)

        # TODO(synk): Dropout(0.5) is identity in eval mode; training-mode RNG
        # masking (pltpu.prng_random_bits) intentionally not applied.

        out = jnp.dot(pooled, fcw_ref[...], preferred_element_type=jnp.float32)
        o_ref[...] = out + fcb_ref[...]                        # (batch_tile, OUT_PAD)

    return kernel


def textcnn_forward(x_emb, conv_w, conv_b, fc_w, fc_b, *, batch_tile=BATCH_TILE):
    """x_emb: (B, L, E) float32 embeddings. Returns logits (B, NUM_CLASSES)."""
    B, L, E = x_emb.shape
    T = L - (KERNEL_H - 1)                  # valid conv output length
    t_pad = _round_up(T, 8)
    C = conv_w.shape[-1]
    k3e = KERNEL_H * E

    # Pad batch up to a multiple of batch_tile; the extra rows are dummy work
    # and are sliced off at the end.
    b_pad = _round_up(B, batch_tile)
    if b_pad != B:
        x_emb = jnp.pad(x_emb, ((0, b_pad - B), (0, 0), (0, 0)))

    # One-time XLA im2col/unfold -> (b_pad, T, 3E); pad the window axis to a
    # multiple of 8 by repeating the last valid window so the in-kernel
    # max-pool result is unchanged.
    unf = jnp.concatenate([x_emb[:, k:k + T, :] for k in range(KERNEL_H)], axis=-1)
    unf = jnp.pad(unf, ((0, 0), (0, t_pad - T), (0, 0)), mode="edge")
    x2d = unf.reshape(b_pad * t_pad, k3e).astype(jnp.float32)

    # Zero-pad channels / classes to full 128-lane width.  Padded conv channels
    # stay 0 through conv+ReLU+pool and hit zero FC rows; padded logit columns
    # are zero and sliced off below.
    cw = jnp.zeros((k3e, C_PAD), jnp.float32).at[:, :C].set(conv_w.reshape(k3e, C))
    cb = jnp.zeros((1, C_PAD), jnp.float32).at[:, :C].set(conv_b.reshape(1, -1))
    fw = jnp.zeros((C_PAD, OUT_PAD), jnp.float32).at[:C, :NUM_CLASSES].set(fc_w)
    fb = jnp.zeros((1, OUT_PAD), jnp.float32).at[:, :NUM_CLASSES].set(fc_b.reshape(1, -1))

    rows = batch_tile * t_pad
    n_tiles = b_pad // batch_tile
    kernel = _make_textcnn_kernel(batch_tile, t_pad)

    flops = 2 * b_pad * t_pad * k3e * C_PAD + 2 * b_pad * C_PAD * OUT_PAD
    bytes_accessed = 4 * (x2d.size + cw.size + cb.size + fw.size + fb.size
                          + b_pad * OUT_PAD)

    out = pl.pallas_call(
        kernel,
        out_shape=jax.ShapeDtypeStruct((b_pad, OUT_PAD), jnp.float32),
        grid_spec=pltpu.PrefetchScalarGridSpec(
            num_scalar_prefetch=0,
            grid=(n_tiles,),
            in_specs=[
                pl.BlockSpec((rows, k3e), lambda b: (b, 0)),
                # Constant block index -> weights DMA'd once, reused every step.
                pl.BlockSpec((k3e, C_PAD), lambda b: (0, 0)),
                pl.BlockSpec((1, C_PAD), lambda b: (0, 0)),
                pl.BlockSpec((C_PAD, OUT_PAD), lambda b: (0, 0)),
                pl.BlockSpec((1, OUT_PAD), lambda b: (0, 0)),
            ],
            out_specs=pl.BlockSpec((batch_tile, OUT_PAD), lambda b: (b, 0)),
        ),
        compiler_params=pltpu.CompilerParams(
            # parallel batch axis: shards across the 2 TensorCores on v7x.
            dimension_semantics=("parallel",),
        ),
        cost_estimate=pl.CostEstimate(
            flops=flops, transcendentals=0, bytes_accessed=bytes_accessed),
    )(x2d, cw, cb, fw, fb)

    return out[:B, :NUM_CLASSES]


def _reference_forward(x_emb, conv_w, conv_b, fc_w, fc_b):
    """Plain-JAX reference with the same semantics as the PyTorch forward."""
    B, L, E = x_emb.shape
    T = L - (KERNEL_H - 1)
    unf = jnp.concatenate([x_emb[:, k:k + T, :] for k in range(KERNEL_H)], axis=-1)
    w_flat = conv_w.reshape(KERNEL_H * E, -1)                        # (3E, C)
    conved = jnp.einsum("btk,kc->btc", unf, w_flat) + conv_b.reshape(1, 1, -1)
    conved = jnp.maximum(conved, 0.0)
    pooled = jnp.max(conved, axis=1)                                 # (B, C)
    return pooled @ fc_w + fc_b.reshape(1, -1)                       # (B, 2)


if __name__ == "__main__":
    key = jax.random.PRNGKey(0)
    k_emb, k_tok, k_cw, k_cb, k_fw, k_fb = jax.random.split(key, 6)

    B = 6   # intentionally not a multiple of BATCH_TILE to exercise batch padding
    # token ids -> deterministic embedding table lookup (stand-in for word2vec)
    tokens = jax.random.randint(k_tok, (B, MAX_LENGTH), 0, VOCAB_SIZE)       # (6, 62)
    emb_table = jax.random.normal(k_emb, (VOCAB_SIZE, EMBEDDING_SIZE), jnp.float32)
    x_emb = jnp.take(emb_table, tokens, axis=0)                              # (B, L, E)

    # Conv2d(1, FILTER_NUM, (3, EMBEDDING_SIZE)) weights, stored as (3, E, C)
    conv_w = 0.1 * jax.random.normal(
        k_cw, (KERNEL_H, EMBEDDING_SIZE, FILTER_NUM), jnp.float32
    )
    conv_b = 0.1 * jax.random.normal(k_cb, (FILTER_NUM,), jnp.float32)

    # Linear(FILTER_NUM, 2) weights, stored as (C, 2) and (2,)
    fc_w = 0.1 * jax.random.normal(k_fw, (FILTER_NUM, NUM_CLASSES), jnp.float32)
    fc_b = 0.1 * jax.random.normal(k_fb, (NUM_CLASSES,), jnp.float32)

    out = textcnn_forward(x_emb, conv_w, conv_b, fc_w, fc_b)
    out = jax.block_until_ready(out)

    ref = _reference_forward(x_emb, conv_w, conv_b, fc_w, fc_b)
    assert out.shape == (B, NUM_CLASSES), out.shape
    assert jnp.allclose(out, ref, atol=1e-4, rtol=1e-4), (out, ref)

    print("KERNEL_OK")
</pallas_src>

<mosaic_0001>
module attributes {stable_mosaic.version = 11 : i64} {
  func.func @kernel(%arg0: i32, %arg1: memref<512x150xf32, #tpu.memory_space<vmem>>, %arg2: memref<150x128xf32, #tpu.memory_space<vmem>>, %arg3: memref<1x128xf32, #tpu.memory_space<vmem>>, %arg4: memref<128x128xf32, #tpu.memory_space<vmem>>, %arg5: memref<1x128xf32, #tpu.memory_space<vmem>>, %arg6: memref<8x128xf32, #tpu.memory_space<vmem>>) attributes {dimension_semantics = [#tpu.dimension_semantics<parallel>], iteration_bounds = array<i64: 1>, scalar_prefetch = 0 : i64, scratch_operands = 0 : i64, tpu.core_type = #tpu.core_type<tc>, window_params = [{transform_indices = @transform_0, window_bounds = array<i64: 512, 150>}, {pipeline_mode = #tpu.pipeline_mode<synchronous>, transform_indices = @transform_1, window_bounds = array<i64: 150, 128>}, {pipeline_mode = #tpu.pipeline_mode<synchronous>, transform_indices = @transform_2, window_bounds = array<i64: 1, 128>}, {pipeline_mode = #tpu.pipeline_mode<synchronous>, transform_indices = @transform_3, window_bounds = array<i64: 128, 128>}, {pipeline_mode = #tpu.pipeline_mode<synchronous>, transform_indices = @transform_4, window_bounds = array<i64: 1, 128>}, {transform_indices = @transform_5, window_bounds = array<i64: 8, 128>}]} {
    %c0 = arith.constant 0 : index
    %c0_0 = arith.constant 0 : index
    %0 = vector.load %arg1[%c0, %c0_0] : memref<512x150xf32, #tpu.memory_space<vmem>>, vector<512x150xf32>
    %c0_1 = arith.constant 0 : index
    %c0_2 = arith.constant 0 : index
    %1 = vector.load %arg2[%c0_1, %c0_2] : memref<150x128xf32, #tpu.memory_space<vmem>>, vector<150x128xf32>
    %cst = arith.constant dense<0.000000e+00> : vector<512x128xf32>
    %2 = tpu.matmul %0, %1, %cst {dimension_numbers = #tpu.dot_dimension_numbers<[1], [0], [0], [1], [0, 0, 1, 1], [], []>} : vector<512x150xf32>, vector<150x128xf32>, vector<512x128xf32> -> vector<512x128xf32>
    %c0_3 = arith.constant 0 : index
    %c0_4 = arith.constant 0 : index
    %3 = vector.load %arg3[%c0_3, %c0_4] : memref<1x128xf32, #tpu.memory_space<vmem>>, vector<1x128xf32>
    %4 = vector.broadcast %3 : vector<1x128xf32> to vector<512x128xf32>
    %5 = arith.addf %2, %4 : vector<512x128xf32>
    %cst_5 = arith.constant 0.000000e+00 : f32
    %6 = vector.broadcast %cst_5 : f32 to vector<512x128xf32>
    %7 = arith.maximumf %5, %6 : vector<512x128xf32>
    %8 = vector.shape_cast %7 : vector<512x128xf32> to vector<8x64x128xf32>
    %cst_6 = arith.constant dense<0xFF800000> : vector<8x128xf32>
    %9 = vector.multi_reduction <maximumf>, %8, %cst_6 [1] : vector<8x64x128xf32> to vector<8x128xf32>
    %c0_7 = arith.constant 0 : index
    %c0_8 = arith.constant 0 : index
    %10 = vector.load %arg4[%c0_7, %c0_8] : memref<128x128xf32, #tpu.memory_space<vmem>>, vector<128x128xf32>
    %cst_9 = arith.constant dense<0.000000e+00> : vector<8x128xf32>
    %11 = tpu.matmul %9, %10, %cst_9 {dimension_numbers = #tpu.dot_dimension_numbers<[1], [0], [0], [1], [0, 0, 1, 1], [], []>} : vector<8x128xf32>, vector<128x128xf32>, vector<8x128xf32> -> vector<8x128xf32>
    %c0_10 = arith.constant 0 : index
    %c0_11 = arith.constant 0 : index
    %12 = vector.load %arg5[%c0_10, %c0_11] : memref<1x128xf32, #tpu.memory_space<vmem>>, vector<1x128xf32>
    %13 = vector.broadcast %12 : vector<1x128xf32> to vector<8x128xf32>
    %14 = arith.addf %11, %13 : vector<8x128xf32>
    %c0_12 = arith.constant 0 : index
    %c0_13 = arith.constant 0 : index
    %15 = vector.load %arg6[%c0_12, %c0_13] : memref<8x128xf32, #tpu.memory_space<vmem>>, vector<8x128xf32>
    tpu.vector_store %arg6[%c0_12, %c0_13], %14 {strides = array<i32>} : memref<8x128xf32, #tpu.memory_space<vmem>>, vector<8x128xf32>,
    return
  }
  func.func @transform_0(%arg0: i32) -> (i32, i32) {
    %c0_i32 = arith.constant 0 : i32
    %c0_i32_0 = arith.constant 0 : i32
    return %arg0, %c0_i32 : i32, i32
  }
  func.func @transform_1(%arg0: i32) -> (i32, i32) {
    %c0_i32 = arith.constant 0 : i32
    %c0_i32_0 = arith.constant 0 : i32
    %c0_i32_1 = arith.constant 0 : i32
    return %c0_i32, %c0_i32_0 : i32, i32
  }
  func.func @transform_2(%arg0: i32) -> (i32, i32) {
    %c0_i32 = arith.constant 0 : i32
    %c0_i32_0 = arith.constant 0 : i32
    %c0_i32_1 = arith.constant 0 : i32
    return %c0_i32, %c0_i32_0 : i32, i32
  }
  func.func @transform_3(%arg0: i32) -> (i32, i32) {
    %c0_i32 = arith.constant 0 : i32
    %c0_i32_0 = arith.constant 0 : i32
    %c0_i32_1 = arith.constant 0 : i32
    return %c0_i32, %c0_i32_0 : i32, i32
  }
  func.func @transform_4(%arg0: i32) -> (i32, i32) {
    %c0_i32 = arith.constant 0 : i32
    %c0_i32_0 = arith.constant 0 : i32
    %c0_i32_1 = arith.constant 0 : i32
    return %c0_i32, %c0_i32_0 : i32, i32
  }
  func.func @transform_5(%arg0: i32) -> (i32, i32) {
    %c0_i32 = arith.constant 0 : i32
    %c0_i32_0 = arith.constant 0 : i32
    return %arg0, %c0_i32 : i32, i32
  }
}

</mosaic_0001>

<llo_original>
// kernel: tpu_custom_call.1
$region0: #{tpu_custom_call.1}
  #allocation0 [shape = 'u32[]', space=smem, size = 0x4, offset = 0x4, fixed_abs, tag = 'smem constant byte address 0x4 - core index']
  #allocation1 [shape = 'u32[144,128]{1,0:T(1,128)}', space=vmem, size = 0x12000, scoped, tag = 'internal scratch']
  %s0 = inlined_call_operand.vmem [shape: f32[512,150], index: 0, kind: input, shape index: {}]
  %s1 = inlined_call_operand.vmem [shape: f32[150,128], index: 1, kind: input, shape index: {}]
  %s2 = inlined_call_operand.vmem [shape: f32[1,128], index: 2, kind: input, shape index: {}]
  %s3 = inlined_call_operand.vmem [shape: f32[128,128], index: 3, kind: input, shape index: {}]
  %s4 = inlined_call_operand.vmem [shape: f32[1,128], index: 4, kind: input, shape index: {}]
  %s5 = inlined_call_operand.hbm [shape: f32[8,128], index: 5, kind: output, shape index: {}]
  %s6 = sld [smem:[#allocation0]]
  $region30: #{tpu_custom_call.1} parent=0
    _
  %s8 = ssub.s32 1, %s6
  %s9 = scalar_select 0, %s8, %s6
  $region1: #{tpu_custom_call.1} parent=0
    #allocation2 [shape = 'u8[4096]{0}', space=vmem, size = 0x1000, scoped, tag = 'output window, operand 0, single buffered']
    #allocation3 [shape = 's32[1]{0}', space=sflag, size = 0x4, scoped, tag = 'scoped memory for tpu_custom_call.1']
    %10 = vsyncpa [#allocation3], 0
    // Predicated region
    $region2: #{tpu_custom_call.1} parent=1 // pred_check
      _
    $region3: #{tpu_custom_call.1} parent=1 // pred_check_branch
      %12 = sbr.rel (0) target = $region5
    $region4: #{tpu_custom_call.1} parent=1 // pred_region
      _
    $region5: #{tpu_custom_call.1} parent=1 // pred_fallthru
      _
    // Predicated region
    $region6: #{tpu_custom_call.1} parent=1 // pred_check
      _
    $region7: #{tpu_custom_call.1} parent=1 // pred_check_branch
      %14 = sbr.rel (0) target = $region9
    $region8: #{tpu_custom_call.1} parent=1 // pred_region
      _
    $region9: #{tpu_custom_call.1} parent=1 // pred_fallthru
      _
    // Predicated region
    $region10: #{tpu_custom_call.1} parent=1 // pred_check
      _
    $region11: #{tpu_custom_call.1} parent=1 // pred_check_branch
      %16 = sbr.rel (0) target = $region13
    $region12: #{tpu_custom_call.1} parent=1 // pred_region
      _
    $region13: #{tpu_custom_call.1} parent=1 // pred_fallthru
      _
    // Predicated region
    $region14: #{tpu_custom_call.1} parent=1 // pred_check
      _
    $region15: #{tpu_custom_call.1} parent=1 // pred_check_branch
      %18 = sbr.rel (0) target = $region17
    $region16: #{tpu_custom_call.1} parent=1 // pred_region
      _
    $region17: #{tpu_custom_call.1} parent=1 // pred_fallthru
      _
    // Predicated region
    $region18: #{tpu_custom_call.1} parent=1 // pred_check
      _
    $region19: #{tpu_custom_call.1} parent=1 // pred_check_branch
      %20 = sbr.rel (0) target = $region21
    $region20: #{tpu_custom_call.1} parent=1 // pred_region
      _
    $region21: #{tpu_custom_call.1} parent=1 // pred_fallthru
      _
    %v21 = vld [vmem:[%s0] sm:$0xff]
    %v22 = vld [vmem:[%s0 + $0x8] sm:$0xff]
    %v23 = vld [vmem:[%s0 + $0x10] sm:$0xff]
    %v24 = vld [vmem:[%s0 + $0x18] sm:$0xff]
    %v25 = vld [vmem:[%s0 + $0x20] sm:$0xff]
    %v26 = vld [vmem:[%s0 + $0x28] sm:$0xff]
    %v27 = vld [vmem:[%s0 + $0x30] sm:$0xff]
    %v28 = vld [vmem:[%s0 + $0x38] sm:$0xff]
    %v29 = vld [vmem:[%s0 + $0x40] sm:$0xff]
    %v30 = vld [vmem:[%s0 + $0x48] sm:$0xff]
    %v31 = vld [vmem:[%s0 + $0x50] sm:$0xff]
    %v32 = vld [vmem:[%s0 + $0x58] sm:$0xff]
    %v33 = vld [vmem:[%s0 + $0x60] sm:$0xff]
    %v34 = vld [vmem:[%s0 + $0x68] sm:$0xff]
    %v35 = vld [vmem:[%s0 + $0x70] sm:$0xff]
    %v36 = vld [vmem:[%s0 + $0x78] sm:$0xff]
    %v37 = vld [vmem:[%s0 + $0x80] sm:$0xff]
    %v38 = vld [vmem:[%s0 + $0x88] sm:$0xff]
    %v39 = vld [vmem:[%s0 + $0x90] sm:$0xff]
    %v40 = vld [vmem:[%s0 + $0x98] sm:$0xff]
    %v41 = vld [vmem:[%s0 + $0xa0] sm:$0xff]
    %v42 = vld [vmem:[%s0 + $0xa8] sm:$0xff]
    %v43 = vld [vmem:[%s0 + $0xb0] sm:$0xff]
    %v44 = vld [vmem:[%s0 + $0xb8] sm:$0xff]
    %v45 = vld [vmem:[%s0 + $0xc0] sm:$0xff]
    %v46 = vld [vmem:[%s0 + $0xc8] sm:$0xff]
    %v47 = vld [vmem:[%s0 + $0xd0] sm:$0xff]
    %v48 = vld [vmem:[%s0 + $0xd8] sm:$0xff]
    %v49 = vld [vmem:[%s0 + $0xe0] sm:$0xff]
    %v50 = vld [vmem:[%s0 + $0xe8] sm:$0xff]
    %v51 = vld [vmem:[%s0 + $0xf0] sm:$0xff]
    %v52 = vld [vmem:[%s0 + $0xf8] sm:$0xff]
    %v53 = vld [vmem:[%s0 + $0x100] sm:$0xff]
    %v54 = vld [vmem:[%s0 + $0x108] sm:$0xff]
    %v55 = vld [vmem:[%s0 + $0x110] sm:$0xff]
    %v56 = vld [vmem:[%s0 + $0x118] sm:$0xff]
    %v57 = vld [vmem:[%s0 + $0x120] sm:$0xff]
    %v58 = vld [vmem:[%s0 + $0x128] sm:$0xff]
    %v59 = vld [vmem:[%s0 + $0x130] sm:$0xff]
    %v60 = vld [vmem:[%s0 + $0x138] sm:$0xff]
    %v61 = vld [vmem:[%s0 + $0x140] sm:$0xff]
    %v62 = vld [vmem:[%s0 + $0x148] sm:$0xff]
    %v63 = vld [vmem:[%s0 + $0x150] sm:$0xff]
    %v64 = vld [vmem:[%s0 + $0x158] sm:$0xff]
    %v65 = vld [vmem:[%s0 + $0x160] sm:$0xff]
    %v66 = vld [vmem:[%s0 + $0x168] sm:$0xff]
    %v67 = vld [vmem:[%s0 + $0x170] sm:$0xff]
    %v68 = vld [vmem:[%s0 + $0x178] sm:$0xff]
    %v69 = vld [vmem:[%s0 + $0x180] sm:$0xff]
    %v70 = vld [vmem:[%s0 + $0x188] sm:$0xff]
    %v71 = vld [vmem:[%s0 + $0x190] sm:$0xff]
    %v72 = vld [vmem:[%s0 + $0x198] sm:$0xff]
    %v73 = vld [vmem:[%s0 + $0x1a0] sm:$0xff]
    %v74 = vld [vmem:[%s0 + $0x1a8] sm:$0xff]
    %v75 = vld [vmem:[%s0 + $0x1b0] sm:$0xff]
    %v76 = vld [vmem:[%s0 + $0x1b8] sm:$0xff]
    %v77 = vld [vmem:[%s0 + $0x1c0] sm:$0xff]
    %v78 = vld [vmem:[%s0 + $0x1c8] sm:$0xff]
    %v79 = vld [vmem:[%s0 + $0x1d0] sm:$0xff]
    %v80 = vld [vmem:[%s0 + $0x1d8] sm:$0xff]
    %v81 = vld [vmem:[%s0 + $0x1e0] sm:$0xff]
    %v82 = vld [vmem:[%s0 + $0x1e8] sm:$0xff]
    %v83 = vld [vmem:[%s0 + $0x1f0] sm:$0xff]
    %v84 = vld [vmem:[%s0 + $0x1f8] sm:$0xff]
    %v85 = vld [vmem:[%s0 + $0x200] sm:$0xff]
    %v86 = vld [vmem:[%s0 + $0x208] sm:$0xff]
    %v87 = vld [vmem:[%s0 + $0x210] sm:$0xff]
    %v88 = vld [vmem:[%s0 + $0x218] sm:$0xff]
    %v89 = vld [vmem:[%s0 + $0x220] sm:$0xff]
    %v90 = vld [vmem:[%s0 + $0x228] sm:$0xff]
    %v91 = vld [vmem:[%s0 + $0x230] sm:$0xff]
    %v92 = vld [vmem:[%s0 + $0x238] sm:$0xff]
    %v93 = vld [vmem:[%s0 + $0x240] sm:$0xff]
    %v94 = vld [vmem:[%s0 + $0x248] sm:$0xff]
    %v95 = vld [vmem:[%s0 + $0x250] sm:$0xff]
    %v96 = vld [vmem:[%s0 + $0x258] sm:$0xff]
    %v97 = vld [vmem:[%s0 + $0x260] sm:$0xff]
    %v98 = vld [vmem:[%s0 + $0x268] sm:$0xff]
    %v99 = vld [vmem:[%s0 + $0x270] sm:$0xff]
    %v100 = vld [vmem:[%s0 + $0x278] sm:$0xff]
    %v101 = vld [vmem:[%s0 + $0x280] sm:$0xff]
    %v102 = vld [vmem:[%s0 + $0x288] sm:$0xff]
    %v103 = vld [vmem:[%s0 + $0x290] sm:$0xff]
    %v104 = vld [vmem:[%s0 + $0x298] sm:$0xff]
    %v105 = vld [vmem:[%s0 + $0x2a0] sm:$0xff]
    %v106 = vld [vmem:[%s0 + $0x2a8] sm:$0xff]
    %v107 = vld [vmem:[%s0 + $0x2b0] sm:$0xff]
    %v108 = vld [vmem:[%s0 + $0x2b8] sm:$0xff]
    %v109 = vld [vmem:[%s0 + $0x2c0] sm:$0xff]
    %v110 = vld [vmem:[%s0 + $0x2c8] sm:$0xff]
    %v111 = vld [vmem:[%s0 + $0x2d0] sm:$0xff]
    %v112 = vld [vmem:[%s0 + $0x2d8] sm:$0xff]
    %v113 = vld [vmem:[%s0 + $0x2e0] sm:$0xff]
    %v114 = vld [vmem:[%s0 + $0x2e8] sm:$0xff]
    %v115 = vld [vmem:[%s0 + $0x2f0] sm:$0xff]
    %v116 = vld [vmem:[%s0 + $0x2f8] sm:$0xff]
    %v117 = vld [vmem:[%s0 + $0x300] sm:$0xff]
    %v118 = vld [vmem:[%s0 + $0x308] sm:$0xff]
    %v119 = vld [vmem:[%s0 + $0x310] sm:$0xff]
    %v120 = vld [vmem:[%s0 + $0x318] sm:$0xff]
    %v121 = vld [vmem:[%s0 + $0x320] sm:$0xff]
    %v122 = vld [vmem:[%s0 + $0x328] sm:$0xff]
    %v123 = vld [vmem:[%s0 + $0x330] sm:$0xff]
    %v124 = vld [vmem:[%s0 + $0x338] sm:$0xff]
    %v125 = vld [vmem:[%s0 + $0x340] sm:$0xff]
    %v126 = vld [vmem:[%s0 + $0x348] sm:$0xff]
    %v127 = vld [vmem:[%s0 + $0x350] sm:$0xff]
    %v128 = vld [vmem:[%s0 + $0x358] sm:$0xff]
    %v129 = vld [vmem:[%s0 + $0x360] sm:$0xff]
    %v130 = vld [vmem:[%s0 + $0x368] sm:$0xff]
    %v131 = vld [vmem:[%s0 + $0x370] sm:$0xff]
    %v132 = vld [vmem:[%s0 + $0x378] sm:$0xff]
    %v133 = vld [vmem:[%s0 + $0x380] sm:$0xff]
    %v134 = vld [vmem:[%s0 + $0x388] sm:$0xff]
    %v135 = vld [vmem:[%s0 + $0x390] sm:$0xff]
    %v136 = vld [vmem:[%s0 + $0x398] sm:$0xff]
    %v137 = vld [vmem:[%s0 + $0x3a0] sm:$0xff]
    %v138 = vld [vmem:[%s0 + $0x3a8] sm:$0xff]
    %v139 = vld [vmem:[%s0 + $0x3b0] sm:$0xff]
    %v140 = vld [vmem:[%s0 + $0x3b8] sm:$0xff]
    %v141 = vld [vmem:[%s0 + $0x3c0] sm:$0xff]
    %v142 = vld [vmem:[%s0 + $0x3c8] sm:$0xff]
    %v143 = vld [vmem:[%s0 + $0x3d0] sm:$0xff]
    %v144 = vld [vmem:[%s0 + $0x3d8] sm:$0xff]
    %v145 = vld [vmem:[%s0 + $0x3e0] sm:$0xff]
    %v146 = vld [vmem:[%s0 + $0x3e8] sm:$0xff]
    %v147 = vld [vmem:[%s0 + $0x3f0] sm:$0xff]
    %v148 = vld [vmem:[%s0 + $0x3f8] sm:$0xff]
    %v149 = vld [vmem:[%s1] sm:$0xff]
    %v150 = vld [vmem:[%s1 + $0x8] sm:$0xff]
    %v151 = vld [vmem:[%s1 + $0x10] sm:$0xff]
    %v152 = vld [vmem:[%s1 + $0x18] sm:$0xff]
    %v153 = vld [vmem:[%s1 + $0x20] sm:$0xff]
    %v154 = vld [vmem:[%s1 + $0x28] sm:$0xff]
    %v155 = vld [vmem:[%s1 + $0x30] sm:$0xff]
    %v156 = vld [vmem:[%s1 + $0x38] sm:$0xff]
    %v157 = vld [vmem:[%s1 + $0x40] sm:$0xff]
    %v158 = vld [vmem:[%s1 + $0x48] sm:$0xff]
    %v159 = vld [vmem:[%s1 + $0x50] sm:$0xff]
    %v160 = vld [vmem:[%s1 + $0x58] sm:$0xff]
    %v161 = vld [vmem:[%s1 + $0x60] sm:$0xff]
    %v162 = vld [vmem:[%s1 + $0x68] sm:$0xff]
    %v163 = vld [vmem:[%s1 + $0x70] sm:$0xff]
    %v164 = vld [vmem:[%s1 + $0x78] sm:$0xff]
    %v165 = vld [vmem:[%s1 + $0x80] sm:$0xff]
    %v166 = vld [vmem:[%s1 + $0x88] sm:$0xff]
    %v167 = vld [vmem:[%s1 + $0x90] sm:$0x3f]
    %v168 = vld [vmem:[%s2] sm:$0x1]
    %v170 = vlaneseq
    %v171 = vshrl.u32 %v170, 7
    %v172 = vsub.s32 0, %v171
    %v173 = vrot.slane %v168, %v172
    %vm175 = vcmask 179200
    %v177 = vsel %vm175, %v22, 0
    %v180 = vsel %vm175, %v24, 0
    %v183 = vsel %vm175, %v26, 0
    %v186 = vsel %vm175, %v28, 0
    %v189 = vsel %vm175, %v30, 0
    %v192 = vsel %vm175, %v32, 0
    %v195 = vsel %vm175, %v34, 0
    %v198 = vsel %vm175, %v36, 0
    %v201 = vsel %vm175, %v38, 0
    %v204 = vsel %vm175, %v40, 0
    %v207 = vsel %vm175, %v42, 0
    %v210 = vsel %vm175, %v44, 0
    %v213 = vsel %vm175, %v46, 0
    %v216 = vsel %vm175, %v48, 0
    %v219 = vsel %vm175, %v50, 0
    %v222 = vsel %vm175, %v52, 0
    %v225 = vsel %vm175, %v54, 0
    %v228 = vsel %vm175, %v56, 0
    %v231 = vsel %vm175, %v58, 0
    %v234 = vsel %vm175, %v60, 0
    %v237 = vsel %vm175, %v62, 0
    %v240 = vsel %vm175, %v64, 0
    %v243 = vsel %vm175, %v66, 0
    %v246 = vsel %vm175, %v68, 0
    %v249 = vsel %vm175, %v70, 0
    %v252 = vsel %vm175, %v72, 0
    %v255 = vsel %vm175, %v74, 0
    %v258 = vsel %vm175, %v76, 0
    %v261 = vsel %vm175, %v78, 0
    %v264 = vsel %vm175, %v80, 0
    %v267 = vsel %vm175, %v82, 0
    %v270 = vsel %vm175, %v84, 0
    %v273 = vsel %vm175, %v86, 0
    %v276 = vsel %vm175, %v88, 0
    %v279 = vsel %vm175, %v90, 0
    %v282 = vsel %vm175, %v92, 0
    %v285 = vsel %vm175, %v94, 0
    %v288 = vsel %vm175, %v96, 0
    %v291 = vsel %vm175, %v98, 0
    %v294 = vsel %vm175, %v100, 0
    %v297 = vsel %vm175, %v102, 0
    %v300 = vsel %vm175, %v104, 0
    %v303 = vsel %vm175, %v106, 0
    %v306 = vsel %vm175, %v108, 0
    %v309 = vsel %vm175, %v110, 0
    %v312 = vsel %vm175, %v112, 0
    %v315 = vsel %vm175, %v114, 0
    %v318 = vsel %vm175, %v116, 0
    %v321 = vsel %vm175, %v118, 0
    %v324 = vsel %vm175, %v120, 0
    %v327 = vsel %vm175, %v122, 0
    %v330 = vsel %vm175, %v124, 0
    %v333 = vsel %vm175, %v126, 0
    %v336 = vsel %vm175, %v128, 0
    %v339 = vsel %vm175, %v130, 0
    %v342 = vsel %vm175, %v132, 0
    %v345 = vsel %vm175, %v134, 0
    %v348 = vsel %vm175, %v136, 0
    %v351 = vsel %vm175, %v138, 0
    %v354 = vsel %vm175, %v140, 0
    %v357 = vsel %vm175, %v142, 0
    %v360 = vsel %vm175, %v144, 0
    %v363 = vsel %vm175, %v146, 0
    %v366 = vsel %vm175, %v148, 0
    %vm368 = vcmask 1045504
    %v370 = vsel %vm368, %v167, 0
    %372 = vmatprep.subr.mxu0 0.0
    %373 = vmatpush1.msra.mxu0 %v149
    %374 = vmatprep.subr.mxu0 0.0
    %375 = vmatpush1.msra.mxu0 %v150
    %376 = vmatprep.subr.mxu0 0.0
    %377 = vmatpush1.msra.mxu0 %v151
    %378 = vmatprep.subr.mxu0 0.0
    %379 = vmatpush1.msra.mxu0 %v152
    %380 = vmatprep.subr.mxu0 0.0
    %381 = vmatpush1.msra.mxu0 %v153
    %382 = vmatprep.subr.mxu0 0.0
    %383 = vmatpush1.msra.mxu0 %v154
    %384 = vmatprep.subr.mxu0 0.0
    %385 = vmatpush1.msra.mxu0 %v155
    %386 = vmatprep.subr.mxu0 0.0
    %387 = vmatpush1.msra.mxu0 %v156
    %388 = vmatprep.subr.mxu0 0.0
    %389 = vmatpush1.msra.mxu0 %v157
    %390 = vmatprep.subr.mxu0 0.0
    %391 = vmatpush1.msra.mxu0 %v158
    %392 = vmatprep.subr.mxu0 0.0
    %393 = vmatpush1.msra.mxu0 %v159
    %394 = vmatprep.subr.mxu0 0.0
    %395 = vmatpush1.msra.mxu0 %v160
    %396 = vmatprep.subr.mxu0 0.0
    %397 = vmatpush1.msra.mxu0 %v161
    %398 = vmatprep.subr.mxu0 0.0
    %399 = vmatpush1.msra.mxu0 %v162
    %400 = vmatprep.subr.mxu0 0.0
    %401 = vmatpush1.msra.mxu0 %v163
    %402 = vmatprep.subr.mxu0 0.0
    %403 = vmatpush1.msra.mxu0 %v164
    %404 = vmatprep.subr.mxu0 0.0
    %405 = vmatpush1.msra.mxu0 %v165
    %406 = vmatprep.subr.mxu0 0.0
    %407 = vmatpush1.msra.mxu0 %v166
    %408 = vmatprep.subr.mxu0 0.0
    %409 = vmatpush1.msra.mxu0 %v370
    %410 = vmatprep.subr.mxu0 0.0
    %411 = vmatpush1.msra.mxu0 0.0
    %412 = vmatprep.subr.mxu0 0.0
    %413 = vmatpush1.msra.mxu0 0.0
    %414 = vmatprep.subr.mxu0 0.0
    %415 = vmatpush1.msra.mxu0 0.0
    %416 = vmatprep.subr.mxu0 0.0
    %417 = vmatpush1.msra.mxu0 0.0
    %418 = vmatprep.subr.mxu0 0.0
    %419 = vmatpush1.msra.mxu0 0.0
    %420 = vmatprep.subr.mxu0 0.0
    %421 = vmatpush1.msra.mxu0 0.0
    %422 = vmatprep.subr.mxu0 0.0
    %423 = vmatpush1.msra.mxu0 0.0
    %424 = vmatprep.subr.mxu0 0.0
    %425 = vmatpush1.msra.mxu0 0.0
    %426 = vmatprep.subr.mxu0 0.0
    %427 = vmatpush1.msra.mxu0 0.0
    %428 = vmatprep.subr.mxu0 0.0
    %429 = vmatpush1.msra.mxu0 0.0
    %430 = vmatprep.subr.mxu0 0.0
    %431 = vmatpush1.msra.mxu0 0.0
    %432 = vmatprep.subr.mxu0 0.0
    %433 = vmatpush1.msra.mxu0 0.0
    %434 = vmatprep.subr.mxu0 0.0
    %435 = vmatpush1.msra.mxu0 0.0
    %436 = vmatprep.mubr.f32.mxu0 %v177
    %437 = vmatmul.mubr.f32.gmra.mrb[0].mxu0 %v21
    %v438 = vpop.f32.mrb[0].mxu0
    %v439 = vadd.f32 %v173, %v438
    %v440 = vpop.f32.mrb[0].mxu0
    %441 = vmatprep.mubr.f32.mxu0 %v180
    %442 = vmatmul.mubr.f32.gmra.mrb[0].mxu0 %v23
    %v443 = vpop.f32.mrb[0].mxu0
    %v444 = vadd.f32 %v173, %v443
    %v445 = vpop.f32.mrb[0].mxu0
    %446 = vmatprep.mubr.f32.mxu0 %v183
    %447 = vmatmul.mubr.f32.gmra.mrb[0].mxu0 %v25
    %v448 = vpop.f32.mrb[0].mxu0
    %v449 = vadd.f32 %v173, %v448
    %v450 = vpop.f32.mrb[0].mxu0
    %451 = vmatprep.mubr.f32.mxu0 %v186
    %452 = vmatmul.mubr.f32.gmra.mrb[0].mxu0 %v27
    %v453 = vpop.f32.mrb[0].mxu0
    %v454 = vadd.f32 %v173, %v453
    %v455 = vpop.f32.mrb[0].mxu0
    %456 = vmatprep.mubr.f32.mxu0 %v189
    %457 = vmatmul.mubr.f32.gmra.mrb[0].mxu0 %v29
    %v458 = vpop.f32.mrb[0].mxu0
    %v459 = vadd.f32 %v173, %v458
    %v460 = vpop.f32.mrb[0].mxu0
    %461 = vmatprep.mubr.f32.mxu0 %v192
    %462 = vmatmul.mubr.f32.gmra.mrb[0].mxu0 %v31
    %v463 = vpop.f32.mrb[0].mxu0
    %v464 = vadd.f32 %v173, %v463
    %v465 = vpop.f32.mrb[0].mxu0
    %466 = vmatprep.mubr.f32.mxu0 %v195
    %467 = vmatmul.mubr.f32.gmra.mrb[0].mxu0 %v33
    %v468 = vpop.f32.mrb[0].mxu0
    %v469 = vadd.f32 %v173, %v468
    %v470 = vpop.f32.mrb[0].mxu0
    %471 = vmatprep.mubr.f32.mxu0 %v198
    %472 = vmatmul.mubr.f32.gmra.mrb[0].mxu0 %v35
    %v473 = vpop.f32.mrb[0].mxu0
    %v474 = vadd.f32 %v173, %v473
    %v475 = vpop.f32.mrb[0].mxu0
    %476 = vmatprep.mubr.f32.mxu0 %v201
    %477 = vmatmul.mubr.f32.gmra.mrb[0].mxu0 %v37
    %v478 = vpop.f32.mrb[0].mxu0
    %v479 = vadd.f32 %v173, %v478
    %v480 = vpop.f32.mrb[0].mxu0
    %481 = vmatprep.mubr.f32.mxu0 %v204
    %482 = vmatmul.mubr.f32.gmra.mrb[0].mxu0 %v39
    %v483 = vpop.f32.mrb[0].mxu0
    %v484 = vadd.f32 %v173, %v483
    %v485 = vpop.f32.mrb[0].mxu0
    %486 = vmatprep.mubr.f32.mxu0 %v207
    %487 = vmatmul.mubr.f32.gmra.mrb[0].mxu0 %v41
    %v488 = vpop.f32.mrb[0].mxu0
    %v489 = vadd.f32 %v173, %v488
    %v490 = vpop.f32.mrb[0].mxu0
    %491 = vmatprep.mubr.f32.mxu0 %v210
    %492 = vmatmul.mubr.f32.gmra.mrb[0].mxu0 %v43
    %v493 = vpop.f32.mrb[0].mxu0
    %v494 = vadd.f32 %v173, %v493
    %v495 = vpop.f32.mrb[0].mxu0
    %496 = vmatprep.mubr.f32.mxu0 %v213
    %497 = vmatmul.mubr.f32.gmra.mrb[0].mxu0 %v45
    %v498 = vpop.f32.mrb[0].mxu0
    %v499 = vadd.f32 %v173, %v498
    %v500 = vpop.f32.mrb[0].mxu0
    %501 = vmatprep.mubr.f32.mxu0 %v216
    %502 = vmatmul.mubr.f32.gmra.mrb[0].mxu0 %v47
    %v503 = vpop.f32.mrb[0].mxu0
    %v504 = vadd.f32 %v173, %v503
    %v505 = vpop.f32.mrb[0].mxu0
    %506 = vmatprep.mubr.f32.mxu0 %v219
    %507 = vmatmul.mubr.f32.gmra.mrb[0].mxu0 %v49
    %v508 = vpop.f32.mrb[0].mxu0
    %v509 = vadd.f32 %v173, %v508
    %v510 = vpop.f32.mrb[0].mxu0
    %511 = vmatprep.mubr.f32.mxu0 %v222
    %512 = vmatmul.mubr.f32.gmra.mrb[0].mxu0 %v51
    %v513 = vpop.f32.mrb[0].mxu0
    %v514 = vadd.f32 %v173, %v513
    %v515 = vpop.f32.mrb[0].mxu0
    %516 = vmatprep.mubr.f32.mxu0 %v225
    %517 = vmatmul.mubr.f32.gmra.mrb[0].mxu0 %v53
    %v518 = vpop.f32.mrb[0].mxu0
    %v519 = vadd.f32 %v173, %v518
    %v520 = vpop.f32.mrb[0].mxu0
    %521 = vmatprep.mubr.f32.mxu0 %v228
    %522 = vmatmul.mubr.f32.gmra.mrb[0].mxu0 %v55
    %v523 = vpop.f32.mrb[0].mxu0
    %v524 = vadd.f32 %v173, %v523
    %v525 = vpop.f32.mrb[0].mxu0
    %526 = vmatprep.mubr.f32.mxu0 %v231
    %527 = vmatmul.mubr.f32.gmra.mrb[0].mxu0 %v57
    %v528 = vpop.f32.mrb[0].mxu0
    %v529 = vadd.f32 %v173, %v528
    %v530 = vpop.f32.mrb[0].mxu0
    %531 = vmatprep.mubr.f32.mxu0 %v234
    %532 = vmatmul.mubr.f32.gmra.mrb[0].mxu0 %v59
    %v533 = vpop.f32.mrb[0].mxu0
    %v534 = vadd.f32 %v173, %v533
    %v535 = vpop.f32.mrb[0].mxu0
    %536 = vmatprep.mubr.f32.mxu0 %v237
    %537 = vmatmul.mubr.f32.gmra.mrb[0].mxu0 %v61
    %v538 = vpop.f32.mrb[0].mxu0
    %v539 = vadd.f32 %v173, %v538
    %v540 = vpop.f32.mrb[0].mxu0
    %541 = vmatprep.mubr.f32.mxu0 %v240
    %542 = vmatmul.mubr.f32.gmra.mrb[0].mxu0 %v63
    %v543 = vpop.f32.mrb[0].mxu0
    %v544 = vadd.f32 %v173, %v543
    %v545 = vpop.f32.mrb[0].mxu0
    %546 = vmatprep.mubr.f32.mxu0 %v243
    %547 = vmatmul.mubr.f32.gmra.mrb[0].mxu0 %v65
    %v548 = vpop.f32.mrb[0].mxu0
    %v549 = vadd.f32 %v173, %v548
    %v550 = vpop.f32.mrb[0].mxu0
    %551 = vmatprep.mubr.f32.mxu0 %v246
    %552 = vmatmul.mubr.f32.gmra.mrb[0].mxu0 %v67
    %v553 = vpop.f32.mrb[0].mxu0
    %v554 = vadd.f32 %v173, %v553
    %v555 = vpop.f32.mrb[0].mxu0
    %556 = vmatprep.mubr.f32.mxu0 %v249
    %557 = vmatmul.mubr.f32.gmra.mrb[0].mxu0 %v69
    %v558 = vpop.f32.mrb[0].mxu0
    %v559 = vadd.f32 %v173, %v558
    %v560 = vpop.f32.mrb[0].mxu0
    %561 = vmatprep.mubr.f32.mxu0 %v252
    %562 = vmatmul.mubr.f32.gmra.mrb[0].mxu0 %v71
    %v563 = vpop.f32.mrb[0].mxu0
    %v564 = vadd.f32 %v173, %v563
    %v565 = vpop.f32.mrb[0].mxu0
    %566 = vmatprep.mubr.f32.mxu0 %v255
    %567 = vmatmul.mubr.f32.gmra.mrb[0].mxu0 %v73
    %v568 = vpop.f32.mrb[0].mxu0
    %v569 = vadd.f32 %v173, %v568
    %v570 = vpop.f32.mrb[0].mxu0
    %571 = vmatprep.mubr.f32.mxu0 %v258
    %572 = vmatmul.mubr.f32.gmra.mrb[0].mxu0 %v75
    %v573 = vpop.f32.mrb[0].mxu0
    %v574 = vadd.f32 %v173, %v573
    %v575 = vpop.f32.mrb[0].mxu0
    %576 = vmatprep.mubr.f32.mxu0 %v261
    %577 = vmatmul.mubr.f32.gmra.mrb[0].mxu0 %v77
    %v578 = vpop.f32.mrb[0].mxu0
    %v579 = vadd.f32 %v173, %v578
    %v580 = vpop.f32.mrb[0].mxu0
    %581 = vmatprep.mubr.f32.mxu0 %v264
    %582 = vmatmul.mubr.f32.gmra.mrb[0].mxu0 %v79
    %v583 = vpop.f32.mrb[0].mxu0
    %v584 = vadd.f32 %v173, %v583
    %v585 = vpop.f32.mrb[0].mxu0
    %586 = vmatprep.mubr.f32.mxu0 %v267
    %587 = vmatmul.mubr.f32.gmra.mrb[0].mxu0 %v81
    %v588 = vpop.f32.mrb[0].mxu0
    %v589 = vadd.f32 %v173, %v588
    %v590 = vpop.f32.mrb[0].mxu0
    %591 = vmatprep.mubr.f32.mxu0 %v270
    %592 = vmatmul.mubr.f32.gmra.mrb[0].mxu0 %v83
    %v593 = vpop.f32.mrb[0].mxu0
    %v594 = vadd.f32 %v173, %v593
    %v595 = vpop.f32.mrb[0].mxu0
    %596 = vmatprep.mubr.f32.mxu0 %v273
    %597 = vmatmul.mubr.f32.gmra.mrb[0].mxu0 %v85
    %v598 = vpop.f32.mrb[0].mxu0
    %v599 = vadd.f32 %v173, %v598
    %v600 = vpop.f32.mrb[0].mxu0
    %601 = vmatprep.mubr.f32.mxu0 %v276
    %602 = vmatmul.mubr.f32.gmra.mrb[0].mxu0 %v87
    %v603 = vpop.f32.mrb[0].mxu0
    %v604 = vadd.f32 %v173, %v603
    %v605 = vpop.f32.mrb[0].mxu0
    %606 = vmatprep.mubr.f32.mxu0 %v279
    %607 = vmatmul.mubr.f32.gmra.mrb[0].mxu0 %v89
    %v608 = vpop.f32.mrb[0].mxu0
    %v609 = vadd.f32 %v173, %v608
    %v610 = vpop.f32.mrb[0].mxu0
    %611 = vmatprep.mubr.f32.mxu0 %v282
    %612 = vmatmul.mubr.f32.gmra.mrb[0].mxu0 %v91
    %v613 = vpop.f32.mrb[0].mxu0
    %v614 = vadd.f32 %v173, %v613
    %v615 = vpop.f32.mrb[0].mxu0
    %616 = vmatprep.mubr.f32.mxu0 %v285
    %617 = vmatmul.mubr.f32.gmra.mrb[0].mxu0 %v93
    %v618 = vpop.f32.mrb[0].mxu0
    %v619 = vadd.f32 %v173, %v618
    %v620 = vpop.f32.mrb[0].mxu0
    %621 = vmatprep.mubr.f32.mxu0 %v288
    %622 = vmatmul.mubr.f32.gmra.mrb[0].mxu0 %v95
    %v623 = vpop.f32.mrb[0].mxu0
    %v624 = vadd.f32 %v173, %v623
    %v625 = vpop.f32.mrb[0].mxu0
    %626 = vmatprep.mubr.f32.mxu0 %v291
    %627 = vmatmul.mubr.f32.gmra.mrb[0].mxu0 %v97
    %v628 = vpop.f32.mrb[0].mxu0
    %v629 = vadd.f32 %v173, %v628
    %v630 = vpop.f32.mrb[0].mxu0
    %631 = vmatprep.mubr.f32.mxu0 %v294
    %632 = vmatmul.mubr.f32.gmra.mrb[0].mxu0 %v99
    %v633 = vpop.f32.mrb[0].mxu0
    %v634 = vadd.f32 %v173, %v633
    %v635 = vpop.f32.mrb[0].mxu0
    %636 = vmatprep.mubr.f32.mxu0 %v297
    %637 = vmatmul.mubr.f32.gmra.mrb[0].mxu0 %v101
    %v638 = vpop.f32.mrb[0].mxu0
    %v639 = vadd.f32 %v173, %v638
    %v640 = vpop.f32.mrb[0].mxu0
    %641 = vmatprep.mubr.f32.mxu0 %v300
    %642 = vmatmul.mubr.f32.gmra.mrb[0].mxu0 %v103
    %v643 = vpop.f32.mrb[0].mxu0
    %v644 = vadd.f32 %v173, %v643
    %v645 = vpop.f32.mrb[0].mxu0
    %646 = vmatprep.mubr.f32.mxu0 %v303
    %647 = vmatmul.mubr.f32.gmra.mrb[0].mxu0 %v105
    %v648 = vpop.f32.mrb[0].mxu0
    %v649 = vadd.f32 %v173, %v648
    %v650 = vpop.f32.mrb[0].mxu0
    %651 = vmatprep.mubr.f32.mxu0 %v306
    %652 = vmatmul.mubr.f32.gmra.mrb[0].mxu0 %v107
    %v653 = vpop.f32.mrb[0].mxu0
    %v654 = vadd.f32 %v173, %v653
    %v655 = vpop.f32.mrb[0].mxu0
    %656 = vmatprep.mubr.f32.mxu0 %v309
    %657 = vmatmul.mubr.f32.gmra.mrb[0].mxu0 %v109
    %v658 = vpop.f32.mrb[0].mxu0
    %v659 = vadd.f32 %v173, %v658
    %v660 = vpop.f32.mrb[0].mxu0
    %661 = vmatprep.mubr.f32.mxu0 %v312
    %662 = vmatmul.mubr.f32.gmra.mrb[0].mxu0 %v111
    %v663 = vpop.f32.mrb[0].mxu0
    %v664 = vadd.f32 %v173, %v663
    %v665 = vpop.f32.mrb[0].mxu0
    %666 = vmatprep.mubr.f32.mxu0 %v315
    %667 = vmatmul.mubr.f32.gmra.mrb[0].mxu0 %v113
    %v668 = vpop.f32.mrb[0].mxu0
    %v669 = vadd.f32 %v173, %v668
    %v670 = vpop.f32.mrb[0].mxu0
    %671 = vmatprep.mubr.f32.mxu0 %v318
    %672 = vmatmul.mubr.f32.gmra.mrb[0].mxu0 %v115
    %v673 = vpop.f32.mrb[0].mxu0
    %v674 = vadd.f32 %v173, %v673
    %v675 = vpop.f32.mrb[0].mxu0
    %676 = vmatprep.mubr.f32.mxu0 %v321
    %677 = vmatmul.mubr.f32.gmra.mrb[0].mxu0 %v117
    %v678 = vpop.f32.mrb[0].mxu0
    %v679 = vadd.f32 %v173, %v678
    %v680 = vpop.f32.mrb[0].mxu0
    %681 = vmatprep.mubr.f32.mxu0 %v324
    %682 = vmatmul.mubr.f32.gmra.mrb[0].mxu0 %v119
    %v683 = vpop.f32.mrb[0].mxu0
    %v684 = vadd.f32 %v173, %v683
    %v685 = vpop.f32.mrb[0].mxu0
    %686 = vmatprep.mubr.f32.mxu0 %v327
    %687 = vmatmul.mubr.f32.gmra.mrb[0].mxu0 %v121
    %v688 = vpop.f32.mrb[0].mxu0
    %v689 = vadd.f32 %v173, %v688
    %v690 = vpop.f32.mrb[0].mxu0
    %691 = vmatprep.mubr.f32.mxu0 %v330
    %692 = vmatmul.mubr.f32.gmra.mrb[0].mxu0 %v123
    %v693 = vpop.f32.mrb[0].mxu0
    %v694 = vadd.f32 %v173, %v693
    %v695 = vpop.f32.mrb[0].mxu0
    %696 = vmatprep.mubr.f32.mxu0 %v333
    %697 = vmatmul.mubr.f32.gmra.mrb[0].mxu0 %v125
    %v698 = vpop.f32.mrb[0].mxu0
    %v699 = vadd.f32 %v173, %v698
    %v700 = vpop.f32.mrb[0].mxu0
    %701 = vmatprep.mubr.f32.mxu0 %v336
    %702 = vmatmul.mubr.f32.gmra.mrb[0].mxu0 %v127
    %v703 = vpop.f32.mrb[0].mxu0
    %v704 = vadd.f32 %v173, %v703
    %v705 = vpop.f32.mrb[0].mxu0
    %706 = vmatprep.mubr.f32.mxu0 %v339
    %707 = vmatmul.mubr.f32.gmra.mrb[0].mxu0 %v129
    %v708 = vpop.f32.mrb[0].mxu0
    %v709 = vadd.f32 %v173, %v708
    %v710 = vpop.f32.mrb[0].mxu0
    %711 = vmatprep.mubr.f32.mxu0 %v342
    %712 = vmatmul.mubr.f32.gmra.mrb[0].mxu0 %v131
    %v713 = vpop.f32.mrb[0].mxu0
    %v714 = vadd.f32 %v173, %v713
    %v715 = vpop.f32.mrb[0].mxu0
    %716 = vmatprep.mubr.f32.mxu0 %v345
    %717 = vmatmul.mubr.f32.gmra.mrb[0].mxu0 %v133
    %v718 = vpop.f32.mrb[0].mxu0
    %v719 = vadd.f32 %v173, %v718
    %v720 = vpop.f32.mrb[0].mxu0
    %721 = vmatprep.mubr.f32.mxu0 %v348
    %722 = vmatmul.mubr.f32.gmra.mrb[0].mxu0 %v135
    %v723 = vpop.f32.mrb[0].mxu0
    %v724 = vadd.f32 %v173, %v723
    %v725 = vpop.f32.mrb[0].mxu0
    %726 = vmatprep.mubr.f32.mxu0 %v351
    %727 = vmatmul.mubr.f32.gmra.mrb[0].mxu0 %v137
    %v728 = vpop.f32.mrb[0].mxu0
    %v729 = vadd.f32 %v173, %v728
    %v730 = vpop.f32.mrb[0].mxu0
    %731 = vmatprep.mubr.f32.mxu0 %v354
    %732 = vmatmul.mubr.f32.gmra.mrb[0].mxu0 %v139
    %v733 = vpop.f32.mrb[0].mxu0
    %v734 = vadd.f32 %v173, %v733
    %v735 = vpop.f32.mrb[0].mxu0
    %736 = vmatprep.mubr.f32.mxu0 %v357
    %737 = vmatmul.mubr.f32.gmra.mrb[0].mxu0 %v141
    %v738 = vpop.f32.mrb[0].mxu0
    %v739 = vadd.f32 %v173, %v738
    %v740 = vpop.f32.mrb[0].mxu0
    %741 = vmatprep.mubr.f32.mxu0 %v360
    %742 = vmatmul.mubr.f32.gmra.mrb[0].mxu0 %v143
    %v743 = vpop.f32.mrb[0].mxu0
    %v744 = vadd.f32 %v173, %v743
    %v745 = vpop.f32.mrb[0].mxu0
    %746 = vmatprep.mubr.f32.mxu0 %v363
    %747 = vmatmul.mubr.f32.gmra.mrb[0].mxu0 %v145
    %v748 = vpop.f32.mrb[0].mxu0
    %v749 = vadd.f32 %v173, %v748
    %v750 = vpop.f32.mrb[0].mxu0
    %751 = vmatprep.mubr.f32.mxu0 %v366
    %752 = vmatmul.mubr.f32.gmra.mrb[0].mxu0 %v147
    %v753 = vpop.f32.mrb[0].mxu0
    %v754 = vadd.f32 %v173, %v753
    %v755 = vpop.f32.mrb[0].mxu0
    %756 = vdwg.mxu0
    %v757 = vmax.f32 %v439, 0.0
    %v758 = vmax.f32 %v444, 0.0
    %v759 = vmax.f32 %v449, 0.0
    %v760 = vmax.f32 %v454, 0.0
    %v761 = vmax.f32 %v459, 0.0
    %v762 = vmax.f32 %v464, 0.0
    %v763 = vmax.f32 %v469, 0.0
    %v764 = vmax.f32 %v474, 0.0
    %v765 = vmax.f32 %v479, 0.0
    %v766 = vmax.f32 %v484, 0.0
    %v767 = vmax.f32 %v489, 0.0
    %v768 = vmax.f32 %v494, 0.0
    %v769 = vmax.f32 %v499, 0.0
    %v770 = vmax.f32 %v504, 0.0
    %v771 = vmax.f32 %v509, 0.0
    %v772 = vmax.f32 %v514, 0.0
    %v773 = vmax.f32 %v519, 0.0
    %v774 = vmax.f32 %v524, 0.0
    %v775 = vmax.f32 %v529, 0.0
    %v776 = vmax.f32 %v534, 0.0
    %v777 = vmax.f32 %v539, 0.0
    %v778 = vmax.f32 %v544, 0.0
    %v779 = vmax.f32 %v549, 0.0
    %v780 = vmax.f32 %v554, 0.0
    %v781 = vmax.f32 %v559, 0.0
    %v782 = vmax.f32 %v564, 0.0
    %v783 = vmax.f32 %v569, 0.0
    %v784 = vmax.f32 %v574, 0.0
    %v785 = vmax.f32 %v579, 0.0
    %v786 = vmax.f32 %v584, 0.0
    %v787 = vmax.f32 %v589, 0.0
    %v788 = vmax.f32 %v594, 0.0
    %v789 = vmax.f32 %v599, 0.0
    %v790 = vmax.f32 %v604, 0.0
    %v791 = vmax.f32 %v609, 0.0
    %v792 = vmax.f32 %v614, 0.0
    %v793 = vmax.f32 %v619, 0.0
    %v794 = vmax.f32 %v624, 0.0
    %v795 = vmax.f32 %v629, 0.0
    %v796 = vmax.f32 %v634, 0.0
    %v797 = vmax.f32 %v639, 0.0
    %v798 = vmax.f32 %v644, 0.0
    %v799 = vmax.f32 %v649, 0.0
    %v800 = vmax.f32 %v654, 0.0
    %v801 = vmax.f32 %v659, 0.0
    %v802 = vmax.f32 %v664, 0.0
    %v803 = vmax.f32 %v669, 0.0
    %v804 = vmax.f32 %v674, 0.0
    %v805 = vmax.f32 %v679, 0.0
    %v806 = vmax.f32 %v684, 0.0
    %v807 = vmax.f32 %v689, 0.0
    %v808 = vmax.f32 %v694, 0.0
    %v809 = vmax.f32 %v699, 0.0
    %v810 = vmax.f32 %v704, 0.0
    %v811 = vmax.f32 %v709, 0.0
    %v812 = vmax.f32 %v714, 0.0
    %v813 = vmax.f32 %v719, 0.0
    %v814 = vmax.f32 %v724, 0.0
    %v815 = vmax.f32 %v729, 0.0
    %v816 = vmax.f32 %v734, 0.0
    %v817 = vmax.f32 %v739, 0.0
    %v818 = vmax.f32 %v744, 0.0
    %v819 = vmax.f32 %v749, 0.0
    %v820 = vmax.f32 %v754, 0.0
    %v821 = vmax.f32 %v757, %v758
    %v822 = vmax.f32 %v821, %v759
    %v823 = vmax.f32 %v822, %v760
    %v824 = vmax.f32 %v823, %v761
    %v825 = vmax.f32 %v824, %v762
    %v826 = vmax.f32 %v825, %v763
    %v827 = vmax.f32 %v826, %v764
    %v828 = vrot.slane %v827, 4
    %v829 = vmax.f32 %v827, %v828
    %v830 = vrot.slane %v829, 2
    %v831 = vmax.f32 %v829, %v830
    %v832 = vrot.slane %v831, 1
    %v833 = vmax.f32 %v831, %v832
    %v834 = vmax.f32 %v765, %v766
    %v835 = vmax.f32 %v834, %v767
    %v836 = vmax.f32 %v835, %v768
    %v837 = vmax.f32 %v836, %v769
    %v838 = vmax.f32 %v837, %v770
    %v839 = vmax.f32 %v838, %v771
    %v840 = vmax.f32 %v839, %v772
    %v841 = vrot.slane %v840, 4
    %v842 = vmax.f32 %v840, %v841
    %v843 = vrot.slane %v842, 2
    %v844 = vmax.f32 %v842, %v843
    %v845 = vrot.slane %v844, 1
    %v846 = vmax.f32 %v844, %v845
    %v847 = vmax.f32 %v773, %v774
    %v848 = vmax.f32 %v847, %v775
    %v849 = vmax.f32 %v848, %v776
    %v850 = vmax.f32 %v849, %v777
    %v851 = vmax.f32 %v850, %v778
    %v852 = vmax.f32 %v851, %v779
    %v853 = vmax.f32 %v852, %v780
    %v854 = vrot.slane %v853, 4
    %v855 = vmax.f32 %v853, %v854
    %v856 = vrot.slane %v855, 2
    %v857 = vmax.f32 %v855, %v856
    %v858 = vrot.slane %v857, 1
    %v859 = vmax.f32 %v857, %v858
    %v860 = vmax.f32 %v781, %v782
    %v861 = vmax.f32 %v860, %v783
    %v862 = vmax.f32 %v861, %v784
    %v863 = vmax.f32 %v862, %v785
    %v864 = vmax.f32 %v863, %v786
    %v865 = vmax.f32 %v864, %v787
    %v866 = vmax.f32 %v865, %v788
    %v867 = vrot.slane %v866, 4
    %v868 = vmax.f32 %v866, %v867
    %v869 = vrot.slane %v868, 2
    %v870 = vmax.f32 %v868, %v869
    %v871 = vrot.slane %v870, 1
    %v872 = vmax.f32 %v870, %v871
    %v873 = vmax.f32 %v789, %v790
    %v874 = vmax.f32 %v873, %v791
    %v875 = vmax.f32 %v874, %v792
    %v876 = vmax.f32 %v875, %v793
    %v877 = vmax.f32 %v876, %v794
    %v878 = vmax.f32 %v877, %v795
    %v879 = vmax.f32 %v878, %v796
    %v880 = vrot.slane %v879, 4
    %v881 = vmax.f32 %v879, %v880
    %v882 = vrot.slane %v881, 2
    %v883 = vmax.f32 %v881, %v882
    %v884 = vrot.slane %v883, 1
    %v885 = vmax.f32 %v883, %v884
    %v886 = vmax.f32 %v797, %v798
    %v887 = vmax.f32 %v886, %v799
    %v888 = vmax.f32 %v887, %v800
    %v889 = vmax.f32 %v888, %v801
    %v890 = vmax.f32 %v889, %v802
    %v891 = vmax.f32 %v890, %v803
    %v892 = vmax.f32 %v891, %v804
    %v893 = vrot.slane %v892, 4
    %v894 = vmax.f32 %v892, %v893
    %v895 = vrot.slane %v894, 2
    %v896 = vmax.f32 %v894, %v895
    %v897 = vrot.slane %v896, 1
    %v898 = vmax.f32 %v896, %v897
    %v899 = vmax.f32 %v805, %v806
    %v900 = vmax.f32 %v899, %v807
    %v901 = vmax.f32 %v900, %v808
    %v902 = vmax.f32 %v901, %v809
    %v903 = vmax.f32 %v902, %v810
    %v904 = vmax.f32 %v903, %v811
    %v905 = vmax.f32 %v904, %v812
    %v906 = vrot.slane %v905, 4
    %v907 = vmax.f32 %v905, %v906
    %v908 = vrot.slane %v907, 2
    %v909 = vmax.f32 %v907, %v908
    %v910 = vrot.slane %v909, 1
    %v911 = vmax.f32 %v909, %v910
    %v912 = vmax.f32 %v813, %v814
    %v913 = vmax.f32 %v912, %v815
    %v914 = vmax.f32 %v913, %v816
    %v915 = vmax.f32 %v914, %v817
    %v916 = vmax.f32 %v915, %v818
    %v917 = vmax.f32 %v916, %v819
    %v918 = vmax.f32 %v917, %v820
    %v919 = vrot.slane %v918, 4
    %v920 = vmax.f32 %v918, %v919
    %v921 = vrot.slane %v920, 2
    %v922 = vmax.f32 %v920, %v921
    %v923 = vrot.slane %v922, 1
    %v924 = vmax.f32 %v922, %v923
    %v925 = vld [vmem:[%s3] sm:$0xff]
    %v926 = vld [vmem:[%s3 + $0x8] sm:$0xff]
    %v927 = vld [vmem:[%s3 + $0x10] sm:$0xff]
    %v928 = vld [vmem:[%s3 + $0x18] sm:$0xff]
    %v929 = vld [vmem:[%s3 + $0x20] sm:$0xff]
    %v930 = vld [vmem:[%s3 + $0x28] sm:$0xff]
    %v931 = vld [vmem:[%s3 + $0x30] sm:$0xff]
    %v932 = vld [vmem:[%s3 + $0x38] sm:$0xff]
    %v933 = vld [vmem:[%s3 + $0x40] sm:$0xff]
    %v934 = vld [vmem:[%s3 + $0x48] sm:$0xff]
    %v935 = vld [vmem:[%s3 + $0x50] sm:$0xff]
    %v936 = vld [vmem:[%s3 + $0x58] sm:$0xff]
    %v937 = vld [vmem:[%s3 + $0x60] sm:$0xff]
    %v938 = vld [vmem:[%s3 + $0x68] sm:$0xff]
    %v939 = vld [vmem:[%s3 + $0x70] sm:$0xff]
    %v940 = vld [vmem:[%s3 + $0x78] sm:$0xff]
    %v941 = vld [vmem:[%s4] sm:$0x1]
    %v943 = vlaneseq
    %v944 = vshrl.u32 %v943, 7
    %v945 = vsub.s32 0, %v944
    %v946 = vrot.slane %v941, %v945
    %vm956 = vcmask 1041409
    %v957 = vsel %vm956, %v846, %v833
    %vm958 = vcmask 1042434
    %v959 = vsel %vm958, %v859, %v957
    %vm960 = vcmask 1043459
    %v961 = vsel %vm960, %v872, %v959
    %vm962 = vcmask 1044484
    %v963 = vsel %vm962, %v885, %v961
    %vm964 = vcmask 1045509
    %v965 = vsel %vm964, %v898, %v963
    %vm966 = vcmask 1046534
    %v967 = vsel %vm966, %v911, %v965
    %vm968 = vcmask 1047559
    %v969 = vsel %vm968, %v924, %v967
    %971 = vmatprep.subr.mxu0 0.0
    %972 = vmatpush1.msra.mxu0 %v925
    %973 = vmatprep.subr.mxu0 0.0
    %974 = vmatpush1.msra.mxu0 %v926
    %975 = vmatprep.subr.mxu0 0.0
    %976 = vmatpush1.msra.mxu0 %v927
    %977 = vmatprep.subr.mxu0 0.0
    %978 = vmatpush1.msra.mxu0 %v928
    %979 = vmatprep.subr.mxu0 0.0
    %980 = vmatpush1.msra.mxu0 %v929
    %981 = vmatprep.subr.mxu0 0.0
    %982 = vmatpush1.msra.mxu0 %v930
    %983 = vmatprep.subr.mxu0 0.0
    %984 = vmatpush1.msra.mxu0 %v931
    %985 = vmatprep.subr.mxu0 0.0
    %986 = vmatpush1.msra.mxu0 %v932
    %987 = vmatprep.subr.mxu0 0.0
    %988 = vmatpush1.msra.mxu0 %v933
    %989 = vmatprep.subr.mxu0 0.0
    %990 = vmatpush1.msra.mxu0 %v934
    %991 = vmatprep.subr.mxu0 0.0
    %992 = vmatpush1.msra.mxu0 %v935
    %993 = vmatprep.subr.mxu0 0.0
    %994 = vmatpush1.msra.mxu0 %v936
    %995 = vmatprep.subr.mxu0 0.0
    %996 = vmatpush1.msra.mxu0 %v937
    %997 = vmatprep.subr.mxu0 0.0
    %998 = vmatpush1.msra.mxu0 %v938
    %999 = vmatprep.subr.mxu0 0.0
    %1000 = vmatpush1.msra.mxu0 %v939
    %1001 = vmatprep.subr.mxu0 0.0
    %1002 = vmatpush1.msra.mxu0 %v940
    %1003 = vmatprep.subr.mxu0 0.0
    %1004 = vmatpush1.msra.mxu0 0.0
    %1005 = vmatprep.subr.mxu0 0.0
    %1006 = vmatpush1.msra.mxu0 0.0
    %1007 = vmatprep.subr.mxu0 0.0
    %1008 = vmatpush1.msra.mxu0 0.0
    %1009 = vmatprep.subr.mxu0 0.0
    %1010 = vmatpush1.msra.mxu0 0.0
    %1011 = vmatprep.subr.mxu0 0.0
    %1012 = vmatpush1.msra.mxu0 0.0
    %1013 = vmatprep.subr.mxu0 0.0
    %1014 = vmatpush1.msra.mxu0 0.0
    %1015 = vmatprep.subr.mxu0 0.0
    %1016 = vmatpush1.msra.mxu0 0.0
    %1017 = vmatprep.subr.mxu0 0.0
    %1018 = vmatpush1.msra.mxu0 0.0
    %1019 = vmatprep.subr.mxu0 0.0
    %1020 = vmatpush1.msra.mxu0 0.0
    %1021 = vmatprep.subr.mxu0 0.0
    %1022 = vmatpush1.msra.mxu0 0.0
    %1023 = vmatprep.subr.mxu0 0.0
    %1024 = vmatpush1.msra.mxu0 0.0
    %1025 = vmatprep.subr.mxu0 0.0
    %1026 = vmatpush1.msra.mxu0 0.0
    %1027 = vmatprep.subr.mxu0 0.0
    %1028 = vmatpush1.msra.mxu0 0.0
    %1029 = vmatprep.subr.mxu0 0.0
    %1030 = vmatpush1.msra.mxu0 0.0
    %1031 = vmatprep.subr.mxu0 0.0
    %1032 = vmatpush1.msra.mxu0 0.0
    %1033 = vmatprep.subr.mxu0 0.0
    %1034 = vmatpush1.msra.mxu0 0.0
    %1035 = vmatprep.mubr.f32.mxu0 0.0
    %1036 = vmatmul.mubr.f32.gmra.mrb[0].mxu0 %v969
    %v1037 = vpop.f32.mrb[0].mxu0
    %v1038 = vadd.f32 %v946, %v1037
    %v1039 = vpop.f32.mrb[0].mxu0
    %1040 = vdwg.mxu0
    %1041 = vst [vmem:[#allocation2] sm:$0xff] %v1038
    // Predicated region
    $region22: #{tpu_custom_call.1} parent=1 // pred_check
      _
    $region23: #{tpu_custom_call.1} parent=1 // pred_check_branch
      %1043 = sbr.rel (0) target = $region25
    $region24: #{tpu_custom_call.1} parent=1 // pred_region
      %s1045 = ssub.s32 128, 128
      %1046 = vsyncadd [#allocation3], %s1045
      %s1048 = sshll.u32 [#allocation2], 4
      %s1049 = int_to_ptr.vmem [resolvable:$true] %s1048
      %1051 = dma.vmem_to_hbm [thread:$0]  %s1049, 128, %s5, [#allocation3]
    $region25: #{tpu_custom_call.1} parent=1 // pred_fallthru
      _
    // Predicated region
    $region26: #{tpu_custom_call.1} parent=1 // pred_check
      _
    $region27: #{tpu_custom_call.1} parent=1 // pred_check_branch
      %1053 = sbr.rel (0) target = $region29
    $region28: #{tpu_custom_call.1} parent=1 // pred_region
      %1054 = dma.done [#allocation3], 128
    $region29: #{tpu_custom_call.1} parent=1 // pred_fallthru
      _
    %1055 = vsyncpa [#allocation3], 1

</llo_original>
